<compile_context>
chip_gen: v6e
topology: v6e:2x2x1
jax: 0.10.0
libtpu: 0.0.40
codegen_flags: <defaults>
</compile_context>

<pallas_src>
import functools

import jax
import jax.numpy as jnp
from jax.experimental import pallas as pl
from jax.experimental.pallas import tpu as pltpu


def basic_block_kernel(x_ref, w_ref, bn_ref, o_ref, rhs_ref, *, L):
    # x_ref  : (C, nb*L)   input slab; channels on sublanes, length on lanes
    # w_ref  : (2, C, 3C)  conv1/conv2 taps; column index = k*Cin + ci
    # bn_ref : (4, C, 1)   folded BN: [scale1, bias1, scale2, bias2]
    # o_ref  : (C, nb*L)   output slab
    # rhs_ref: (3C, nb*L)  persistent matmul-RHS staging scratch
    C, NBL = x_ref.shape
    mm_dtype = rhs_ref.dtype

    # Per-sample position along the length axis; the slab holds nb samples of
    # length L back to back on the lane axis.
    col = jax.lax.broadcasted_iota(jnp.int32, (C, NBL), 1)
    pos = col % L
    not_first = pos != 0            # zero the l-1 neighbour at l == 0
    not_last = pos != (L - 1)       # zero the l+1 neighbour at l == L-1

    x = x_ref[...].astype(jnp.float32)
    w1 = w_ref[0]
    w2 = w_ref[1]
    s1 = bn_ref[0]
    b1 = bn_ref[1]
    s2 = bn_ref[2]
    b2 = bn_ref[3]

    # Sublane slice stores are pack-aligned only when C is a multiple of the
    # rows-per-tile of mm_dtype (8 for f32, 16 for bf16); otherwise fall back
    # to a concatenate (still a single matmul per conv).
    packing = 4 // jnp.dtype(mm_dtype).itemsize
    use_scratch = (C % (8 * packing)) == 0

    def build_rhs(left, mid, right):
        if use_scratch:
            rhs_ref[0:C, :] = left.astype(mm_dtype)
            rhs_ref[C:2 * C, :] = mid.astype(mm_dtype)
            rhs_ref[2 * C:3 * C, :] = right.astype(mm_dtype)
            return rhs_ref[...]
        return jnp.concatenate([left, mid, right], axis=0).astype(mm_dtype)

    # ---- conv1 + bn1 + relu: one (C,3C)@(3C,nb*L) MXU matmul ---------------
    xl = jnp.where(not_first, pltpu.roll(x, shift=1, axis=1), 0.0)
    xr = jnp.where(not_last, pltpu.roll(x, shift=NBL - 1, axis=1), 0.0)
    h = jnp.dot(w1, build_rhs(xl, x, xr), preferred_element_type=jnp.float32)
    h = jnp.maximum(h * s1 + b1, 0.0)

    # ---- conv2 + bn2 + residual + relu -------------------------------------
    hl = jnp.where(not_first, pltpu.roll(h, shift=1, axis=1), 0.0)
    hr = jnp.where(not_last, pltpu.roll(h, shift=NBL - 1, axis=1), 0.0)
    o = jnp.dot(w2, build_rhs(hl, h, hr), preferred_element_type=jnp.float32)
    o = jnp.maximum(o * s2 + b2 + x, 0.0)
    o_ref[...] = o.astype(o_ref.dtype)


def _choose_batch_block(N, C, L, itemsize, target_bytes=1 << 20):
    """Pick nb = samples per grid step: divisor of N, lane width nb*L a
    multiple of 128 (or the full array), input block <= ~1 MiB, preferring
    >= 2 grid steps so both v7x TensorCores get work."""
    divisors = [d for d in range(1, N + 1) if N % d == 0]
    valid = [d for d in divisors if (d * L) % 128 == 0 or d == N]
    if not valid:
        valid = [N]
    multi = [d for d in valid if N // d >= 2]
    cands = multi if multi else valid
    fitting = [d for d in cands if d * C * L * itemsize <= target_bytes]
    return max(fitting) if fitting else min(cands)


def basic_block_1d(x, w1, bn1, w2, bn2, *, eps=1e-5,
                   compute_dtype=jnp.float32, batch_block=None):
    """x: (N, C, L) float (PyTorch NCL layout).
    w1/w2: (Cout, Cin, 3) PyTorch conv1d weights (Cout == Cin == C here).
    bn1/bn2: dicts with gamma, beta, mean, var of shape (C,).
    compute_dtype: MXU operand dtype. Keep float32 unless C >= ~256 (v6e/v7x)
    or on v5e's bf16-only MXU; at small C the kernel is HBM-bound."""
    N, C, L = x.shape
    assert w1.shape == (C, C, 3) and w2.shape == (C, C, 3)

    if batch_block is None:
        batch_block = _choose_batch_block(N, C, L, jnp.dtype(x.dtype).itemsize)
    nb = batch_block
    assert N % nb == 0, "batch_block must divide N"
    assert (nb * L) % 128 == 0 or nb == N, (
        "lane width nb*L should be a multiple of 128 (or use batch_block=N)")

    # Layout plumbing (not compute): (N, C, L) -> (C, N*L) so the length axis
    # is lane-dense and the batch folds into the matmul N dimension.
    x2d = jnp.transpose(x, (1, 0, 2)).reshape(C, N * L)

    # conv weights (Cout, Cin, 3) -> (Cout, 3*Cin), column index = k*Cin + ci
    def flat_w(w):
        return jnp.transpose(w, (0, 2, 1)).reshape(C, 3 * C)

    w_pack = jnp.stack([flat_w(w1), flat_w(w2)], axis=0).astype(compute_dtype)

    def fold_bn(bn):
        scale = bn["gamma"] / jnp.sqrt(bn["var"] + eps)
        bias = bn["beta"] - bn["mean"] * scale
        return scale, bias

    s1, b1 = fold_bn(bn1)
    s2, b2 = fold_bn(bn2)
    bn_pack = jnp.stack([s1, b1, s2, b2], axis=0).astype(jnp.float32)
    bn_pack = bn_pack.reshape(4, C, 1)

    # VMEM budget: double-buffered in/out slabs + params, plus the (3C, nb*L)
    # RHS staging scratch and in-flight f32 temporaries; capped at 48 MiB
    # (v7x physical VMEM is 64 MiB).
    cd_isz = jnp.dtype(compute_dtype).itemsize
    blk = nb * C * L
    x_blk = blk * jnp.dtype(x.dtype).itemsize
    o_blk = blk * jnp.dtype(x.dtype).itemsize
    w_bytes = 2 * C * 3 * C * cd_isz
    bn_bytes = 4 * C * 128 * 4          # (C,1) lanes pad to 128 in VMEM
    rhs_bytes = 3 * blk * cd_isz
    tmp_bytes = 8 * blk * 4             # xl/xr/h/hl/hr/o f32 temporaries
    needed = 2 * (x_blk + o_blk + w_bytes + bn_bytes) + rhs_bytes + tmp_bytes
    vmem_limit = int(min(48 * 1024 * 1024, needed + 8 * 1024 * 1024))

    kernel = functools.partial(basic_block_kernel, L=L)

    out2d = pl.pallas_call(
        kernel,
        out_shape=jax.ShapeDtypeStruct((C, N * L), x.dtype),
        grid_spec=pltpu.PrefetchScalarGridSpec(
            num_scalar_prefetch=0,
            grid=(N // nb,),
            in_specs=[
                pl.BlockSpec((C, nb * L), lambda n: (0, n)),       # x slab
                pl.BlockSpec((2, C, 3 * C), lambda n: (0, 0, 0)),  # weights
                pl.BlockSpec((4, C, 1), lambda n: (0, 0, 0)),      # folded BN
            ],
            out_specs=pl.BlockSpec((C, nb * L), lambda n: (0, n)),
            scratch_shapes=[pltpu.VMEM((3 * C, nb * L), compute_dtype)],
        ),
        compiler_params=pltpu.CompilerParams(
            dimension_semantics=("parallel",),
            vmem_limit_bytes=vmem_limit,
        ),
    )(x2d, w_pack, bn_pack)

    # back to PyTorch NCL layout
    return jnp.transpose(out2d.reshape(C, N, L), (1, 0, 2))


# ----------------------------- reference ----------------------------------
def ref_basic_block_1d(x, w1, bn1, w2, bn2, eps=1e-5):
    def conv(x, w):
        return jax.lax.conv_general_dilated(
            x, w, window_strides=(1,), padding=[(1, 1)],
            dimension_numbers=("NCH", "OIH", "NCH"),
            precision=jax.lax.Precision.HIGHEST)

    def bn(x, p):
        g = p["gamma"].reshape(1, -1, 1)
        b = p["beta"].reshape(1, -1, 1)
        m = p["mean"].reshape(1, -1, 1)
        v = p["var"].reshape(1, -1, 1)
        return (x - m) / jnp.sqrt(v + eps) * g + b

    out = jax.nn.relu(bn(conv(x, w1), bn1))
    out = bn(conv(out, w2), bn2)
    return jax.nn.relu(out + x)


if __name__ == "__main__":
    key = jax.random.PRNGKey(0)
    # small shapes; L=128 keeps the lane axis dense (one vreg row per sample)
    N, C, L = 4, 8, 128
    ks = jax.random.split(key, 8)

    x = jax.random.normal(ks[0], (N, C, L), jnp.float32)
    w1 = jax.random.normal(ks[1], (C, C, 3), jnp.float32) * 0.2
    w2 = jax.random.normal(ks[2], (C, C, 3), jnp.float32) * 0.2
    bn1 = dict(gamma=jax.random.normal(ks[3], (C,)) * 0.1 + 1.0,
               beta=jax.random.normal(ks[4], (C,)) * 0.1,
               mean=jax.random.normal(ks[5], (C,)) * 0.1,
               var=jax.random.uniform(ks[6], (C,), minval=0.5, maxval=1.5))
    bn2 = dict(gamma=jnp.ones((C,)), beta=jnp.zeros((C,)),
               mean=jax.random.normal(ks[7], (C,)) * 0.1,
               var=jnp.ones((C,)))

    ref = jax.block_until_ready(ref_basic_block_1d(x, w1, bn1, w2, bn2))

    # default: batch_block auto-chosen (nb=2 here -> 2 parallel grid steps)
    out = jax.block_until_ready(basic_block_1d(x, w1, bn1, w2, bn2))
    assert out.shape == (N, C, L)
    err = float(jnp.max(jnp.abs(out - ref)))
    assert jnp.allclose(out, ref, atol=2e-2, rtol=2e-2), f"max err {err}"

    # smaller slab (grid=4): must match the reference and the default result
    out1 = jax.block_until_ready(
        basic_block_1d(x, w1, bn1, w2, bn2, batch_block=1))
    err1 = float(jnp.max(jnp.abs(out1 - ref)))
    assert jnp.allclose(out1, ref, atol=2e-2, rtol=2e-2), f"max err {err1}"
    assert jnp.allclose(out1, out, atol=1e-5, rtol=1e-5)

    print("KERNEL_OK")
</pallas_src>

<mosaic_0001>
module attributes {stable_mosaic.version = 11 : i64} {
  func.func @basic_block_kernel(%arg0: i32, %arg1: memref<8x256xf32, #tpu.memory_space<vmem>>, %arg2: memref<2x8x24xf32, #tpu.memory_space<vmem>>, %arg3: memref<4x8x1xf32, #tpu.memory_space<vmem>>, %arg4: memref<8x256xf32, #tpu.memory_space<vmem>>, %arg5: memref<24x256xf32, #tpu.memory_space<vmem>>) attributes {dimension_semantics = [#tpu.dimension_semantics<parallel>], iteration_bounds = array<i64: 2>, scalar_prefetch = 0 : i64, scratch_operands = 1 : i64, tpu.core_type = #tpu.core_type<tc>, window_params = [{transform_indices = @transform_0, window_bounds = array<i64: 8, 256>}, {pipeline_mode = #tpu.pipeline_mode<synchronous>, transform_indices = @transform_1, window_bounds = array<i64: 2, 8, 24>}, {pipeline_mode = #tpu.pipeline_mode<synchronous>, transform_indices = @transform_2, window_bounds = array<i64: 4, 8, 1>}, {transform_indices = @transform_3, window_bounds = array<i64: 8, 256>}]} {
    %0 = tpu.iota {dimensions = array<i32: 1>} : vector<8x256xi32>
    %c128_i32 = arith.constant 128 : i32
    %c0_i32 = arith.constant 0 : i32
    %1 = arith.cmpi eq, %c128_i32, %c0_i32 : i32
    %c1_i32 = arith.constant 1 : i32
    %2 = arith.select %1, %c1_i32, %c128_i32 : i32
    %3 = vector.broadcast %2 : i32 to vector<8x256xi32>
    %4 = arith.remsi %0, %3 : vector<8x256xi32>
    %c0_i32_0 = arith.constant 0 : i32
    %5 = vector.broadcast %c0_i32_0 : i32 to vector<8x256xi32>
    %6 = arith.cmpi ne, %4, %5 : vector<8x256xi32>
    %c0_i32_1 = arith.constant 0 : i32
    %7 = vector.broadcast %c0_i32_1 : i32 to vector<8x256xi32>
    %8 = arith.cmpi slt, %4, %7 : vector<8x256xi32>
    %c0_i32_2 = arith.constant 0 : i32
    %9 = arith.cmpi slt, %2, %c0_i32_2 : i32
    %10 = vector.broadcast %9 : i1 to vector<8x256xi1>
    %11 = vector.broadcast %10 : vector<8x256xi1> to vector<8x256xi1>
    %12 = arith.xori %8, %11 : vector<8x256xi1>
    %13 = arith.andi %12, %6 : vector<8x256xi1>
    %14 = vector.broadcast %2 : i32 to vector<8x256xi32>
    %15 = arith.addi %4, %14 : vector<8x256xi32>
    %16 = arith.select %13, %15, %4 : vector<8x256xi1>, vector<8x256xi32>
    %c0_i32_3 = arith.constant 0 : i32
    %17 = vector.broadcast %c0_i32_3 : i32 to vector<8x256xi32>
    %18 = arith.cmpi ne, %16, %17 : vector<8x256xi32>
    %c127_i32 = arith.constant 127 : i32
    %19 = vector.broadcast %c127_i32 : i32 to vector<8x256xi32>
    %20 = arith.cmpi ne, %16, %19 : vector<8x256xi32>
    %c0 = arith.constant 0 : index
    %c0_4 = arith.constant 0 : index
    %21 = vector.load %arg1[%c0, %c0_4] : memref<8x256xf32, #tpu.memory_space<vmem>>, vector<8x256xf32>
    %c0_5 = arith.constant 0 : index
    %c0_6 = arith.constant 0 : index
    %c0_7 = arith.constant 0 : index
    %22 = vector.load %arg2[%c0_5, %c0_6, %c0_7] : memref<2x8x24xf32, #tpu.memory_space<vmem>>, vector<1x8x24xf32>
    %23 = vector.shape_cast %22 : vector<1x8x24xf32> to vector<8x24xf32>
    %c1 = arith.constant 1 : index
    %c0_8 = arith.constant 0 : index
    %c0_9 = arith.constant 0 : index
    %24 = vector.load %arg2[%c1, %c0_8, %c0_9] : memref<2x8x24xf32, #tpu.memory_space<vmem>>, vector<1x8x24xf32>
    %25 = vector.shape_cast %24 : vector<1x8x24xf32> to vector<8x24xf32>
    %c0_10 = arith.constant 0 : index
    %c0_11 = arith.constant 0 : index
    %c0_12 = arith.constant 0 : index
    %26 = vector.load %arg3[%c0_10, %c0_11, %c0_12] : memref<4x8x1xf32, #tpu.memory_space<vmem>>, vector<1x8x1xf32>
    %27 = vector.shape_cast %26 : vector<1x8x1xf32> to vector<8x1xf32>
    %c1_13 = arith.constant 1 : index
    %c0_14 = arith.constant 0 : index
    %c0_15 = arith.constant 0 : index
    %28 = vector.load %arg3[%c1_13, %c0_14, %c0_15] : memref<4x8x1xf32, #tpu.memory_space<vmem>>, vector<1x8x1xf32>
    %29 = vector.shape_cast %28 : vector<1x8x1xf32> to vector<8x1xf32>
    %c2 = arith.constant 2 : index
    %c0_16 = arith.constant 0 : index
    %c0_17 = arith.constant 0 : index
    %30 = vector.load %arg3[%c2, %c0_16, %c0_17] : memref<4x8x1xf32, #tpu.memory_space<vmem>>, vector<1x8x1xf32>
    %31 = vector.shape_cast %30 : vector<1x8x1xf32> to vector<8x1xf32>
    %c3 = arith.constant 3 : index
    %c0_18 = arith.constant 0 : index
    %c0_19 = arith.constant 0 : index
    %32 = vector.load %arg3[%c3, %c0_18, %c0_19] : memref<4x8x1xf32, #tpu.memory_space<vmem>>, vector<1x8x1xf32>
    %33 = vector.shape_cast %32 : vector<1x8x1xf32> to vector<8x1xf32>
    %c1_i32_20 = arith.constant 1 : i32
    %34 = tpu.dynamic_rotate %21 by %c1_i32_20 dim 1 : vector<8x256xf32>, i32 -> vector<8x256xf32>
    %cst = arith.constant 0.000000e+00 : f32
    %35 = vector.broadcast %cst : f32 to vector<8x256xf32>
    %36 = arith.select %18, %34, %35 : vector<8x256xi1>, vector<8x256xf32>
    %c255_i32 = arith.constant 255 : i32
    %37 = tpu.dynamic_rotate %21 by %c255_i32 dim 1 : vector<8x256xf32>, i32 -> vector<8x256xf32>
    %cst_21 = arith.constant 0.000000e+00 : f32
    %38 = vector.broadcast %cst_21 : f32 to vector<8x256xf32>
    %39 = arith.select %20, %37, %38 : vector<8x256xi1>, vector<8x256xf32>
    %c0_22 = arith.constant 0 : index
    %c0_23 = arith.constant 0 : index
    %40 = vector.load %arg5[%c0_22, %c0_23] : memref<24x256xf32, #tpu.memory_space<vmem>>, vector<8x256xf32>
    tpu.vector_store %arg5[%c0_22, %c0_23], %36 {strides = array<i32>} : memref<24x256xf32, #tpu.memory_space<vmem>>, vector<8x256xf32>,
    %c8 = arith.constant 8 : index
    %c0_24 = arith.constant 0 : index
    %41 = vector.load %arg5[%c8, %c0_24] : memref<24x256xf32, #tpu.memory_space<vmem>>, vector<8x256xf32>
    tpu.vector_store %arg5[%c8, %c0_24], %21 {strides = array<i32>} : memref<24x256xf32, #tpu.memory_space<vmem>>, vector<8x256xf32>,
    %c16 = arith.constant 16 : index
    %c0_25 = arith.constant 0 : index
    %42 = vector.load %arg5[%c16, %c0_25] : memref<24x256xf32, #tpu.memory_space<vmem>>, vector<8x256xf32>
    tpu.vector_store %arg5[%c16, %c0_25], %39 {strides = array<i32>} : memref<24x256xf32, #tpu.memory_space<vmem>>, vector<8x256xf32>,
    %c0_26 = arith.constant 0 : index
    %c0_27 = arith.constant 0 : index
    %43 = vector.load %arg5[%c0_26, %c0_27] : memref<24x256xf32, #tpu.memory_space<vmem>>, vector<24x256xf32>
    %cst_28 = arith.constant dense<0.000000e+00> : vector<8x256xf32>
    %44 = tpu.matmul %23, %43, %cst_28 {dimension_numbers = #tpu.dot_dimension_numbers<[1], [0], [0], [1], [0, 0, 1, 1], [], []>} : vector<8x24xf32>, vector<24x256xf32>, vector<8x256xf32> -> vector<8x256xf32>
    %45 = vector.broadcast %27 : vector<8x1xf32> to vector<8x256xf32>
    %46 = arith.mulf %44, %45 : vector<8x256xf32>
    %47 = vector.broadcast %29 : vector<8x1xf32> to vector<8x256xf32>
    %48 = arith.addf %46, %47 : vector<8x256xf32>
    %cst_29 = arith.constant 0.000000e+00 : f32
    %49 = vector.broadcast %cst_29 : f32 to vector<8x256xf32>
    %50 = arith.maximumf %48, %49 : vector<8x256xf32>
    %c1_i32_30 = arith.constant 1 : i32
    %51 = tpu.dynamic_rotate %50 by %c1_i32_30 dim 1 : vector<8x256xf32>, i32 -> vector<8x256xf32>
    %cst_31 = arith.constant 0.000000e+00 : f32
    %52 = vector.broadcast %cst_31 : f32 to vector<8x256xf32>
    %53 = arith.select %18, %51, %52 : vector<8x256xi1>, vector<8x256xf32>
    %c255_i32_32 = arith.constant 255 : i32
    %54 = tpu.dynamic_rotate %50 by %c255_i32_32 dim 1 : vector<8x256xf32>, i32 -> vector<8x256xf32>
    %cst_33 = arith.constant 0.000000e+00 : f32
    %55 = vector.broadcast %cst_33 : f32 to vector<8x256xf32>
    %56 = arith.select %20, %54, %55 : vector<8x256xi1>, vector<8x256xf32>
    %c0_34 = arith.constant 0 : index
    %c0_35 = arith.constant 0 : index
    %57 = vector.load %arg5[%c0_34, %c0_35] : memref<24x256xf32, #tpu.memory_space<vmem>>, vector<8x256xf32>
    tpu.vector_store %arg5[%c0_34, %c0_35], %53 {strides = array<i32>} : memref<24x256xf32, #tpu.memory_space<vmem>>, vector<8x256xf32>,
    %c8_36 = arith.constant 8 : index
    %c0_37 = arith.constant 0 : index
    %58 = vector.load %arg5[%c8_36, %c0_37] : memref<24x256xf32, #tpu.memory_space<vmem>>, vector<8x256xf32>
    tpu.vector_store %arg5[%c8_36, %c0_37], %50 {strides = array<i32>} : memref<24x256xf32, #tpu.memory_space<vmem>>, vector<8x256xf32>,
    %c16_38 = arith.constant 16 : index
    %c0_39 = arith.constant 0 : index
    %59 = vector.load %arg5[%c16_38, %c0_39] : memref<24x256xf32, #tpu.memory_space<vmem>>, vector<8x256xf32>
    tpu.vector_store %arg5[%c16_38, %c0_39], %56 {strides = array<i32>} : memref<24x256xf32, #tpu.memory_space<vmem>>, vector<8x256xf32>,
    %c0_40 = arith.constant 0 : index
    %c0_41 = arith.constant 0 : index
    %60 = vector.load %arg5[%c0_40, %c0_41] : memref<24x256xf32, #tpu.memory_space<vmem>>, vector<24x256xf32>
    %cst_42 = arith.constant dense<0.000000e+00> : vector<8x256xf32>
    %61 = tpu.matmul %25, %60, %cst_42 {dimension_numbers = #tpu.dot_dimension_numbers<[1], [0], [0], [1], [0, 0, 1, 1], [], []>} : vector<8x24xf32>, vector<24x256xf32>, vector<8x256xf32> -> vector<8x256xf32>
    %62 = vector.broadcast %31 : vector<8x1xf32> to vector<8x256xf32>
    %63 = arith.mulf %61, %62 : vector<8x256xf32>
    %64 = vector.broadcast %33 : vector<8x1xf32> to vector<8x256xf32>
    %65 = arith.addf %63, %64 : vector<8x256xf32>
    %66 = arith.addf %65, %21 : vector<8x256xf32>
    %cst_43 = arith.constant 0.000000e+00 : f32
    %67 = vector.broadcast %cst_43 : f32 to vector<8x256xf32>
    %68 = arith.maximumf %66, %67 : vector<8x256xf32>
    %c0_44 = arith.constant 0 : index
    %c0_45 = arith.constant 0 : index
    %69 = vector.load %arg4[%c0_44, %c0_45] : memref<8x256xf32, #tpu.memory_space<vmem>>, vector<8x256xf32>
    tpu.vector_store %arg4[%c0_44, %c0_45], %68 {strides = array<i32>} : memref<8x256xf32, #tpu.memory_space<vmem>>, vector<8x256xf32>,
    return
  }
  func.func @transform_0(%arg0: i32) -> (i32, i32) {
    %c0_i32 = arith.constant 0 : i32
    %c0_i32_0 = arith.constant 0 : i32
    return %c0_i32, %arg0 : i32, i32
  }
  func.func @transform_1(%arg0: i32) -> (i32, i32, i32) {
    %c0_i32 = arith.constant 0 : i32
    %c0_i32_0 = arith.constant 0 : i32
    %c0_i32_1 = arith.constant 0 : i32
    %c0_i32_2 = arith.constant 0 : i32
    return %c0_i32, %c0_i32_0, %c0_i32_1 : i32, i32, i32
  }
  func.func @transform_2(%arg0: i32) -> (i32, i32, i32) {
    %c0_i32 = arith.constant 0 : i32
    %c0_i32_0 = arith.constant 0 : i32
    %c0_i32_1 = arith.constant 0 : i32
    %c0_i32_2 = arith.constant 0 : i32
    return %c0_i32, %c0_i32_0, %c0_i32_1 : i32, i32, i32
  }
  func.func @transform_3(%arg0: i32) -> (i32, i32) {
    %c0_i32 = arith.constant 0 : i32
    %c0_i32_0 = arith.constant 0 : i32
    return %c0_i32, %arg0 : i32, i32
  }
}

</mosaic_0001>

<llo_original>
// kernel: tpu_custom_call.1
$region0: #{tpu_custom_call.1}
  #allocation0 [shape = 'u32[]', space=smem, size = 0x4, offset = 0x4, fixed_abs, tag = 'smem constant byte address 0x4 - core index']
  #allocation1 [shape = 'u32[144,128]{1,0:T(1,128)}', space=vmem, size = 0x12000, scoped, tag = 'internal scratch']
  #allocation2 [shape = 'f32[24,256]{1,0:T(8,128)}', space=vmem, size = 0x6000, scoped, tag = 'scratch operand']
  %s0 = inlined_call_operand.vmem [shape: f32[8,512], index: 0, kind: input, shape index: {}]
  %s1 = inlined_call_operand.hbm [shape: f32[2,8,24], index: 1, kind: input, shape index: {}]
  %s2 = inlined_call_operand.vmem [shape: f32[4,8,1], index: 2, kind: input, shape index: {}]
  %s3 = inlined_call_operand.hbm [shape: f32[8,512], index: 3, kind: output, shape index: {}]
  %s4 = sld [smem:[#allocation0]]
  $region49: #{tpu_custom_call.1} parent=0
    _
  %s6 = ssub.s32 1, %s4
  %s7 = scalar_select 0, %s6, %s4
  $region1: #{tpu_custom_call.1} parent=0
    #allocation3 [shape = 'u8[8192]{0}', space=vmem, size = 0x2000, scoped, tag = 'input window, operand 1, single buffered']
    #allocation4 [shape = 's32[2]{0}', space=sflag, size = 0x8, scoped, tag = 'scoped memory for tpu_custom_call.1']
    #allocation5 [shape = 's32[2]{0}', space=sflag, size = 0x8, scoped, tag = 'scoped memory for tpu_custom_call.1']
    #allocation6 [shape = 'u8[16384]{0}', space=vmem, size = 0x4000, scoped, tag = 'output window, operand 0']
    %8 = vsyncpa [#allocation4], 0
    %9 = vsyncpa [#allocation5], 0
    %s10 = scalar_lea.sflag [#allocation5], 1
    %11 = vsyncpa %s10, 0
    loop: start=0, step=1, limit=4
    $region2: #{tpu_custom_call.1} parent=1 // loop_pre_header
      _
    $region3: #{tpu_custom_call.1} parent=1 // loop_header
      %s13 = sphi 0, %s17
      %p14 = scmp.ge.s32.totalorder %s13, 4
      %s23 = sphi 0, %s25
      %s26 = sphi 0, %s23
      %s27 = sphi 0, %s26
      %s43 = sphi 0, %s27
      %s47 = sphi 0, %s47
      %s49 = sphi 0, %s47
      %s50 = sphi 0, %s49
      %s64 = sphi 0, %s50
      %s68 = sphi 0, %s68
      %s70 = sphi 0, %s68
      %s71 = sphi 0, %s70
      %s85 = sphi 0, %s71
      %s91 = sphi 0, %s93
      %s94 = sphi 0, %s91
      %s95 = sphi 0, %s94
      %s111 = sphi 0, %s95
    $region4: #{tpu_custom_call.1} parent=1 // loop_header_branch
      %16 = sbr.rel (%p14) target = $region8
    $region5: #{tpu_custom_call.1} parent=1 // loop_body
      %s18 = ssub.s32 %s13, 1
      %s19 = ssub.s32 %s13, 2
      %s20 = sadd.s32 %s13, 1
      %s21 = ssub.s32 %s13, %s20
      %p22 = scmp.eq.s32.totalorder %s21, 0
      %s24 = sadd.s32 %s23, 1
      %s25 = scalar_select %p22, %s23, %s24
      %p28 = pneg %p22
      %p29 = scmp.eq.s32.totalorder %s13, 1
      %p30 = por %p28, %p29
      %p31 = scmp.ne.s32.totalorder %s23, %s26
      %p32 = scmp.eq.s32.totalorder %s13, 0
      %p33 = por %p31, %p32
      %p34 = scmp.ne.s32.totalorder %s23, %s26
      %p35 = scmp.eq.s32.totalorder %s18, 1
      %p36 = por %p34, %p35
      %p37 = scmp.ne.s32.totalorder %s26, %s27
      %p38 = scmp.eq.s32.totalorder %s18, 0
      %p39 = por %p37, %p38
      %p40 = scmp.ne.s32.totalorder %s26, %s27
      %p41 = scmp.eq.s32.totalorder %s19, 1
      %p42 = por %p40, %p41
      %p44 = scmp.ne.s32.totalorder %s27, %s43
      %p45 = scmp.eq.s32.totalorder %s19, 0
      %p46 = por %p44, %p45
      %s48 = sadd.s32 %s47, 1
      %p51 = scmp.eq.s32.totalorder %s13, 1
      %p52 = scmp.ne.s32.totalorder %s47, %s49
      %p53 = scmp.eq.s32.totalorder %s13, 0
      %p54 = por %p52, %p53
      %p55 = scmp.ne.s32.totalorder %s47, %s49
      %p56 = scmp.eq.s32.totalorder %s18, 1
      %p57 = por %p55, %p56
      %p58 = scmp.ne.s32.totalorder %s49, %s50
      %p59 = scmp.eq.s32.totalorder %s18, 0
      %p60 = por %p58, %p59
      %p61 = scmp.ne.s32.totalorder %s49, %s50
      %p62 = scmp.eq.s32.totalorder %s19, 1
      %p63 = por %p61, %p62
      %p65 = scmp.ne.s32.totalorder %s50, %s64
      %p66 = scmp.eq.s32.totalorder %s19, 0
      %p67 = por %p65, %p66
      %s69 = sadd.s32 %s68, 1
      %p72 = scmp.eq.s32.totalorder %s13, 1
      %p73 = scmp.ne.s32.totalorder %s68, %s70
      %p74 = scmp.eq.s32.totalorder %s13, 0
      %p75 = por %p73, %p74
      %p76 = scmp.ne.s32.totalorder %s68, %s70
      %p77 = scmp.eq.s32.totalorder %s18, 1
      %p78 = por %p76, %p77
      %p79 = scmp.ne.s32.totalorder %s70, %s71
      %p80 = scmp.eq.s32.totalorder %s18, 0
      %p81 = por %p79, %p80
      %p82 = scmp.ne.s32.totalorder %s70, %s71
      %p83 = scmp.eq.s32.totalorder %s19, 1
      %p84 = por %p82, %p83
      %p86 = scmp.ne.s32.totalorder %s71, %s85
      %p87 = scmp.eq.s32.totalorder %s19, 0
      %p88 = por %p86, %p87
      %s89 = ssub.s32 %s13, %s20
      %p90 = scmp.eq.s32.totalorder %s89, 0
      %s92 = sadd.s32 %s91, 1
      %s93 = scalar_select %p90, %s91, %s92
      %p96 = pneg %p90
      %p97 = scmp.eq.s32.totalorder %s13, 1
      %p98 = por %p96, %p97
      %p99 = scmp.ne.s32.totalorder %s91, %s94
      %p100 = scmp.eq.s32.totalorder %s13, 0
      %p101 = por %p99, %p100
      %p102 = scmp.ne.s32.totalorder %s91, %s94
      %p103 = scmp.eq.s32.totalorder %s18, 1
      %p104 = por %p102, %p103
      %p105 = scmp.ne.s32.totalorder %s94, %s95
      %p106 = scmp.eq.s32.totalorder %s18, 0
      %p107 = por %p105, %p106
      %p108 = scmp.ne.s32.totalorder %s94, %s95
      %p109 = scmp.eq.s32.totalorder %s19, 1
      %p110 = por %p108, %p109
      %p112 = scmp.ne.s32.totalorder %s95, %s111
      %p113 = scmp.eq.s32.totalorder %s19, 0
      %p114 = por %p112, %p113
      %p115 = scmp.le.s32.totalorder 1, %s13
      %p116 = scmp.lt.s32.totalorder %s13, 3
      %p117 = pnand %p115, %p116
      %p118 = pneg %p117
      // Predicated region
      $region9: #{tpu_custom_call.1} parent=5 // pred_check
        _
      $region10: #{tpu_custom_call.1} parent=5 // pred_check_branch
        %120 = sbr.rel (%p117) target = $region12
      $region11: #{tpu_custom_call.1} parent=5 // pred_region
        %s121 = ssub.s32 %s13, 1
        // Predicated region
        $region13: #{tpu_custom_call.1} parent=11 // pred_check
          %p122 = pneg %p60
        $region14: #{tpu_custom_call.1} parent=11 // pred_check_branch
          %124 = sbr.rel (%p122) target = $region16
        $region15: #{tpu_custom_call.1} parent=11 // pred_region
          %s126 = ssub.s32 256, 256
          %127 = vsyncadd [#allocation4], %s126
          %s128 = sshll.u32 [#allocation3], 4
          %s129 = int_to_ptr.vmem [resolvable:$true] %s128
          %134 = dma.hbm_to_vmem [thread:$0]  %s1, 256, %s129, [#allocation4], 128, 128, 8
        $region16: #{tpu_custom_call.1} parent=11 // pred_fallthru
          _
        // Predicated region
        $region17: #{tpu_custom_call.1} parent=11 // pred_check
          %p135 = pneg %p81
        $region18: #{tpu_custom_call.1} parent=11 // pred_check_branch
          %137 = sbr.rel (%p135) target = $region20
        $region19: #{tpu_custom_call.1} parent=11 // pred_region
          _
        $region20: #{tpu_custom_call.1} parent=11 // pred_fallthru
          _
      $region12: #{tpu_custom_call.1} parent=5 // pred_fallthru
        _
      %p138 = scmp.lt.s32.totalorder %s13, 2
      // Predicated region
      $region21: #{tpu_custom_call.1} parent=5 // pred_check
        %p139 = pneg %p138
      $region22: #{tpu_custom_call.1} parent=5 // pred_check_branch
        %141 = sbr.rel (%p139) target = $region24
      $region23: #{tpu_custom_call.1} parent=5 // pred_region
        // Predicated region
        $region25: #{tpu_custom_call.1} parent=23 // pred_check
          %p142 = pneg %p33
        $region26: #{tpu_custom_call.1} parent=23 // pred_check_branch
          %144 = sbr.rel (%p142) target = $region28
        $region27: #{tpu_custom_call.1} parent=23 // pred_region
          %s145 = smul.u32 2, %s13
          %p146 = scmp.lt.s32.totalorder %s145, 3
          %s147 = scalar_select %p146, %s145, 3
          %s148 = smul.addr %s147, 8
          %s149 = scalar_lea.vmem %s0, %s148
          %s150 = smul.u32 2, %s13
        $region28: #{tpu_custom_call.1} parent=23 // pred_fallthru
          _
      $region24: #{tpu_custom_call.1} parent=5 // pred_fallthru
        _
      %p151 = scmp.le.s32.totalorder 1, %s13
      %p152 = scmp.lt.s32.totalorder %s13, 3
      %p153 = pnand %p151, %p152
      %p154 = pneg %p153
      // Predicated region
      $region29: #{tpu_custom_call.1} parent=5 // pred_check
        _
      $region30: #{tpu_custom_call.1} parent=5 // pred_check_branch
        %156 = sbr.rel (%p153) target = $region32
      $region31: #{tpu_custom_call.1} parent=5 // pred_region
        %s157 = ssub.s32 %s13, 1
        // Predicated region
        $region33: #{tpu_custom_call.1} parent=31 // pred_check
          %p158 = pneg %p60
        $region34: #{tpu_custom_call.1} parent=31 // pred_check_branch
          %160 = sbr.rel (%p158) target = $region36
        $region35: #{tpu_custom_call.1} parent=31 // pred_region
          %161 = dma.done [#allocation4], 256
        $region36: #{tpu_custom_call.1} parent=31 // pred_fallthru
          _
        %s162 = smul.u32 2, %s18
        %p163 = scmp.lt.s32.totalorder %s162, 3
        %s164 = scalar_select %p163, %s162, 3
        %s165 = smul.addr %s164, 8
        %s166 = scalar_lea.vmem %s0, %s165
        %p167 = pneg %p39
        %p168 = pneg %p36
        %p169 = pneg %p60
        %p170 = pneg %p57
        %p171 = pneg %p81
        %p172 = pneg %p78
        %p173 = pneg %p107
        %p174 = pneg %p104
        %s175 = sand.u32 %s94, 1
        %s176 = scalar_lea.sflag [#allocation5], %s175
        %s177 = sand.u32 %s94, 1
        %s178 = smul.addr %s177, 16
        %s179 = scalar_lea.vmem [#allocation6], %s178
        %s180 = smul.u32 2, %s18
        %p181 = scmp.lt.s32.totalorder %s180, 3
        %s182 = scalar_select %p181, %s180, 3
        %s183 = smul.addr %s182, 8
        %s184 = scalar_lea.vmem %s0, %s183
        %s185 = smul.u32 2, %s18
        %s186 = smul.u32 2, %s18
        %v187 = vlaneseq
        %v188 = vand.u32 %v187, 127
        %v189 = vadd.s32 %v188, 128
        %vm190 = vcmp.lt.s32.totalorder %v188, 0
        %v191 = vsub.s32 0, %v188
        %v192 = vsel %vm190, %v191, %v188
        %v193 = vshrl.u32 %v192, 7
        %v194 = vand.u32 %v192, 127
        %v195 = vsub.s32 0, %v194
        %v196 = vsel %vm190, %v195, %v194
        %vm197 = vcmp.lt.s32.totalorder %v189, 0
        %v198 = vsub.s32 0, %v189
        %v199 = vsel %vm197, %v198, %v189
        %v200 = vshrl.u32 %v199, 7
        %v201 = vand.u32 %v199, 127
        %v202 = vsub.s32 0, %v201
        %v203 = vsel %vm197, %v202, %v201
        %vm204 = vcmp.ne.s32.totalorder %v196, 0
        %vm205 = vcmp.ne.s32.totalorder %v203, 0
        %vm206 = vcmp.lt.s32.totalorder %v196, 0
        %vm207 = vcmp.lt.s32.totalorder %v203, 0
        %vm208 = vmand %vm206, %vm204
        %vm209 = vmand %vm207, %vm205
        %v210 = vadd.s32 %v196, 128
        %v211 = vadd.s32 %v203, 128
        %v212 = vsel %vm208, %v210, %v196
        %v213 = vsel %vm209, %v211, %v203
        %vm214 = vcmp.ne.s32.totalorder %v212, 0
        %vm215 = vcmp.ne.s32.totalorder %v213, 0
        %vm216 = vcmp.ne.s32.totalorder %v212, 127
        %vm217 = vcmp.ne.s32.totalorder %v213, 127
        %v218 = vld [vmem:[%s184] sm:$0xff]
        %v219 = vld [vmem:[%s184 + $0x8] sm:$0xff]
        %v220 = vld [vmem:[#allocation3] sm:$0xff]
        %s221 = scalar_lea.vmem [#allocation3], 8
        %v222 = vld [vmem:[%s221] sm:$0xff]
        %v223 = vld [vmem:[%s2] sm:$0xff]
        %s224 = scalar_lea.vmem %s2, 8
        %v225 = vld [vmem:[%s224] sm:$0xff]
        %s226 = scalar_lea.vmem %s2, 16
        %v227 = vld [vmem:[%s226] sm:$0xff]
        %s228 = scalar_lea.vmem %s2, 24
        %v229 = vld [vmem:[%s228] sm:$0xff]
        %230 = vrot.lane.b32.xlu0 %v218, 1
        %v231 = vpop.permute.xlu0 %230
        %232 = vrot.lane.b32.xlu0 %v219, 1
        %v233 = vpop.permute.xlu0 %232
        %vm234 = vcmp.lt.s32.totalorder %v188, 1
        %v235 = vsel %vm234, %v231, %v233
        %v236 = vsel %vm234, %v233, %v231
        %v237 = vsel %vm214, %v236, 0.0
        %v238 = vsel %vm215, %v235, 0.0
        %239 = vrot.lane.b32.xlu0 %v218, 127
        %v240 = vpop.permute.xlu0 %239
        %241 = vrot.lane.b32.xlu0 %v219, 127
        %v242 = vpop.permute.xlu0 %241
        %vm243 = vcmp.lt.s32.totalorder %v188, 127
        %v244 = vsel %vm243, %v240, %v242
        %v245 = vsel %vm243, %v242, %v240
        %v246 = vsel %vm216, %v244, 0.0
        %v247 = vsel %vm217, %v245, 0.0
        %248 = vst [vmem:[#allocation2] sm:$0xff] %v237
        %249 = vst [vmem:[#allocation2 + $0x8] sm:$0xff] %v238
        %250 = vst [vmem:[#allocation2 + $0x10] sm:$0xff] %v218
        %251 = vst [vmem:[#allocation2 + $0x18] sm:$0xff] %v219
        %252 = vst [vmem:[#allocation2 + $0x20] sm:$0xff] %v246
        %253 = vst [vmem:[#allocation2 + $0x28] sm:$0xff] %v247
        %v254 = vld [vmem:[#allocation2] sm:$0xff]
        %v255 = vld [vmem:[#allocation2 + $0x8] sm:$0xff]
        %v256 = vld [vmem:[#allocation2 + $0x10] sm:$0xff]
        %v257 = vld [vmem:[#allocation2 + $0x18] sm:$0xff]
        %v258 = vld [vmem:[#allocation2 + $0x20] sm:$0xff]
        %v259 = vld [vmem:[#allocation2 + $0x28] sm:$0xff]
        %vm260 = vcmask 195584
        %v262 = vsel %vm260, %v220, 0
        %264 = vmatprep.subr.mxu0 0.0
        %265 = vmatpush1.msra.mxu0 0.0
        %266 = vmatprep.subr.mxu0 0.0
        %267 = vmatpush1.msra.mxu0 0.0
        %268 = vmatprep.subr.mxu0 0.0
        %269 = vmatpush1.msra.mxu0 0.0
        %270 = vmatprep.subr.mxu0 0.0
        %271 = vmatpush1.msra.mxu0 0.0
        %272 = vmatprep.subr.mxu0 0.0
        %273 = vmatpush1.msra.mxu0 0.0
        %274 = vmatprep.subr.mxu0 0.0
        %275 = vmatpush1.msra.mxu0 0.0
        %276 = vmatprep.subr.mxu0 0.0
        %277 = vmatpush1.msra.mxu0 0.0
        %278 = vmatprep.subr.mxu0 0.0
        %279 = vmatpush1.msra.mxu0 0.0
        %280 = vmatprep.subr.mxu0 0.0
        %281 = vmatpush1.msra.mxu0 0.0
        %282 = vmatprep.subr.mxu0 0.0
        %283 = vmatpush1.msra.mxu0 0.0
        %284 = vmatprep.subr.mxu0 0.0
        %285 = vmatpush1.msra.mxu0 0.0
        %286 = vmatprep.subr.mxu0 0.0
        %287 = vmatpush1.msra.mxu0 0.0
        %288 = vmatprep.subr.mxu0 0.0
        %289 = vmatpush1.msra.mxu0 0.0
        %290 = vmatprep.subr.mxu0 %v259
        %291 = vmatpush1.msra.mxu0 %v258
        %292 = vmatprep.subr.mxu0 %v257
        %293 = vmatpush1.msra.mxu0 %v256
        %294 = vmatprep.subr.mxu0 %v255
        %295 = vmatpush1.msra.mxu0 %v254
        %296 = vmatprep.subr.mxu0 0.0
        %297 = vmatpush2.msra.mxu0 0.0
        %298 = vmatprep.subr.mxu0 0.0
        %299 = vmatpush2.msra.mxu0 0.0
        %300 = vmatprep.subr.mxu0 0.0
        %301 = vmatpush2.msra.mxu0 0.0
        %302 = vmatprep.subr.mxu0 0.0
        %303 = vmatpush2.msra.mxu0 0.0
        %304 = vmatprep.subr.mxu0 0.0
        %305 = vmatpush2.msra.mxu0 0.0
        %306 = vmatprep.subr.mxu0 0.0
        %307 = vmatpush2.msra.mxu0 0.0
        %308 = vmatprep.subr.mxu0 0.0
        %309 = vmatpush2.msra.mxu0 0.0
        %310 = vmatprep.subr.mxu0 0.0
        %311 = vmatpush2.msra.mxu0 0.0
        %312 = vmatprep.subr.mxu0 0.0
        %313 = vmatpush2.msra.mxu0 0.0
        %314 = vmatprep.subr.mxu0 0.0
        %315 = vmatpush2.msra.mxu0 0.0
        %316 = vmatprep.subr.mxu0 0.0
        %317 = vmatpush2.msra.mxu0 0.0
        %318 = vmatprep.subr.mxu0 0.0
        %319 = vmatpush2.msra.mxu0 0.0
        %320 = vmatprep.subr.mxu0 0.0
        %321 = vmatpush2.msra.mxu0 0.0
        %322 = vmatprep.subr.mxu0 0.0
        %323 = vmatpush2.msra.mxu0 0.0
        %324 = vmatprep.subr.mxu0 0.0
        %325 = vmatpush2.msra.mxu0 0.0
        %326 = vmatprep.subr.mxu0 0.0
        %327 = vmatpush2.msra.mxu0 0.0
        %328 = vmatprep.mubr.f32.mxu0 0.0
        %329 = vmatmul.mubr.f32.gmra.mxu0 %v262
        %v330 = vpop.f32.mrf.mxu0
        %v331 = vadd.f32 0.0, %v330
        %v332 = vpop.f32.mrf.mxu0
        %v333 = vadd.f32 0.0, %v332
        %334 = vdwg.mxu0
        %336 = vset.pattern.permute.xlu0 0
        %337 = vperm.xlu0 %336, %v223
        %v338 = vpop.permute.xlu0 %337
        %v340 = vmul.f32 %v331, %v338
        %v341 = vmul.f32 %v333, %v338
        %343 = vset.pattern.permute.xlu0 0
        %344 = vperm.xlu0 %343, %v225
        %v345 = vpop.permute.xlu0 %344
        %v347 = vadd.f32 %v340, %v345
        %v348 = vadd.f32 %v341, %v345
        %v349 = vmax.f32 %v347, 0.0
        %v350 = vmax.f32 %v348, 0.0
        %351 = vrot.lane.b32.xlu0 %v349, 1
        %v352 = vpop.permute.xlu0 %351
        %353 = vrot.lane.b32.xlu0 %v350, 1
        %v354 = vpop.permute.xlu0 %353
        %v355 = vsel %vm234, %v352, %v354
        %v356 = vsel %vm234, %v354, %v352
        %v357 = vsel %vm214, %v356, 0.0
        %v358 = vsel %vm215, %v355, 0.0
        %359 = vrot.lane.b32.xlu0 %v349, 127
        %v360 = vpop.permute.xlu0 %359
        %361 = vrot.lane.b32.xlu0 %v350, 127
        %v362 = vpop.permute.xlu0 %361
        %v363 = vsel %vm243, %v360, %v362
        %v364 = vsel %vm243, %v362, %v360
        %v365 = vsel %vm216, %v363, 0.0
        %v366 = vsel %vm217, %v364, 0.0
        %367 = vst [vmem:[#allocation2] sm:$0xff] %v357
        %368 = vst [vmem:[#allocation2 + $0x8] sm:$0xff] %v358
        %369 = vst [vmem:[#allocation2 + $0x10] sm:$0xff] %v349
        %370 = vst [vmem:[#allocation2 + $0x18] sm:$0xff] %v350
        %371 = vst [vmem:[#allocation2 + $0x20] sm:$0xff] %v365
        %372 = vst [vmem:[#allocation2 + $0x28] sm:$0xff] %v366
        %v373 = vld [vmem:[#allocation2] sm:$0xff]
        %v374 = vld [vmem:[#allocation2 + $0x8] sm:$0xff]
        %v375 = vld [vmem:[#allocation2 + $0x10] sm:$0xff]
        %v376 = vld [vmem:[#allocation2 + $0x18] sm:$0xff]
        %v377 = vld [vmem:[#allocation2 + $0x20] sm:$0xff]
        %v378 = vld [vmem:[#allocation2 + $0x28] sm:$0xff]
        %v380 = vsel %vm260, %v222, 0
        %382 = vmatprep.subr.mxu0 0.0
        %383 = vmatpush1.msra.mxu0 0.0
        %384 = vmatprep.subr.mxu0 0.0
        %385 = vmatpush1.msra.mxu0 0.0
        %386 = vmatprep.subr.mxu0 0.0
        %387 = vmatpush1.msra.mxu0 0.0
        %388 = vmatprep.subr.mxu0 0.0
        %389 = vmatpush1.msra.mxu0 0.0
        %390 = vmatprep.subr.mxu0 0.0
        %391 = vmatpush1.msra.mxu0 0.0
        %392 = vmatprep.subr.mxu0 0.0
        %393 = vmatpush1.msra.mxu0 0.0
        %394 = vmatprep.subr.mxu0 0.0
        %395 = vmatpush1.msra.mxu0 0.0
        %396 = vmatprep.subr.mxu0 0.0
        %397 = vmatpush1.msra.mxu0 0.0
        %398 = vmatprep.subr.mxu0 0.0
        %399 = vmatpush1.msra.mxu0 0.0
        %400 = vmatprep.subr.mxu0 0.0
        %401 = vmatpush1.msra.mxu0 0.0
        %402 = vmatprep.subr.mxu0 0.0
        %403 = vmatpush1.msra.mxu0 0.0
        %404 = vmatprep.subr.mxu0 0.0
        %405 = vmatpush1.msra.mxu0 0.0
        %406 = vmatprep.subr.mxu0 0.0
        %407 = vmatpush1.msra.mxu0 0.0
        %408 = vmatprep.subr.mxu0 %v378
        %409 = vmatpush1.msra.mxu0 %v377
        %410 = vmatprep.subr.mxu0 %v376
        %411 = vmatpush1.msra.mxu0 %v375
        %412 = vmatprep.subr.mxu0 %v374
        %413 = vmatpush1.msra.mxu0 %v373
        %414 = vmatprep.subr.mxu0 0.0
        %415 = vmatpush2.msra.mxu0 0.0
        %416 = vmatprep.subr.mxu0 0.0
        %417 = vmatpush2.msra.mxu0 0.0
        %418 = vmatprep.subr.mxu0 0.0
        %419 = vmatpush2.msra.mxu0 0.0
        %420 = vmatprep.subr.mxu0 0.0
        %421 = vmatpush2.msra.mxu0 0.0
        %422 = vmatprep.subr.mxu0 0.0
        %423 = vmatpush2.msra.mxu0 0.0
        %424 = vmatprep.subr.mxu0 0.0
        %425 = vmatpush2.msra.mxu0 0.0
        %426 = vmatprep.subr.mxu0 0.0
        %427 = vmatpush2.msra.mxu0 0.0
        %428 = vmatprep.subr.mxu0 0.0
        %429 = vmatpush2.msra.mxu0 0.0
        %430 = vmatprep.subr.mxu0 0.0
        %431 = vmatpush2.msra.mxu0 0.0
        %432 = vmatprep.subr.mxu0 0.0
        %433 = vmatpush2.msra.mxu0 0.0
        %434 = vmatprep.subr.mxu0 0.0
        %435 = vmatpush2.msra.mxu0 0.0
        %436 = vmatprep.subr.mxu0 0.0
        %437 = vmatpush2.msra.mxu0 0.0
        %438 = vmatprep.subr.mxu0 0.0
        %439 = vmatpush2.msra.mxu0 0.0
        %440 = vmatprep.subr.mxu0 0.0
        %441 = vmatpush2.msra.mxu0 0.0
        %442 = vmatprep.subr.mxu0 0.0
        %443 = vmatpush2.msra.mxu0 0.0
        %444 = vmatprep.subr.mxu0 0.0
        %445 = vmatpush2.msra.mxu0 0.0
        %446 = vmatprep.mubr.f32.mxu0 0.0
        %447 = vmatmul.mubr.f32.gmra.mxu0 %v380
        %v448 = vpop.f32.mrf.mxu0
        %v449 = vadd.f32 0.0, %v448
        %v450 = vpop.f32.mrf.mxu0
        %v451 = vadd.f32 0.0, %v450
        %452 = vdwg.mxu0
        %454 = vset.pattern.permute.xlu0 0
        %455 = vperm.xlu0 %454, %v227
        %v456 = vpop.permute.xlu0 %455
        %v458 = vmul.f32 %v449, %v456
        %v459 = vmul.f32 %v451, %v456
        %461 = vset.pattern.permute.xlu0 0
        %462 = vperm.xlu0 %461, %v229
        %v463 = vpop.permute.xlu0 %462
        %v465 = vadd.f32 %v458, %v463
        %v466 = vadd.f32 %v459, %v463
        %v467 = vadd.f32 %v465, %v218
        %v468 = vadd.f32 %v466, %v219
        %v469 = vmax.f32 %v467, 0.0
        %v470 = vmax.f32 %v468, 0.0
        %471 = vst [vmem:[%s179] sm:$0xff] %v469
        %472 = vst [vmem:[%s179 + $0x8] sm:$0xff] %v470
        %s473 = sand.u32 %s94, 1
        %s474 = scalar_lea.sflag [#allocation5], %s473
        %s475 = sand.u32 %s94, 1
        %s476 = smul.addr %s475, 16
        %s477 = scalar_lea.vmem [#allocation6], %s476
        // Predicated region
        $region37: #{tpu_custom_call.1} parent=31 // pred_check
          %p478 = pneg %p104
        $region38: #{tpu_custom_call.1} parent=31 // pred_check_branch
          %480 = sbr.rel (%p478) target = $region40
        $region39: #{tpu_custom_call.1} parent=31 // pred_region
          %s481 = smul.u32 2, %s18
          %s483 = ssub.s32 256, 256
          %484 = vsyncadd %s474, %s483
          %s485 = smul.addr %s481, 128
          %s486 = scalar_lea.hbm %s3, %s485
          %s488 = sshll.u32 %s477, 4
          %s489 = int_to_ptr.vmem [resolvable:$true] %s488
          %491 = dma.vmem_to_hbm [thread:$0]  %s489, 256, %s486, %s474
        $region40: #{tpu_custom_call.1} parent=31 // pred_fallthru
          _
      $region32: #{tpu_custom_call.1} parent=5 // pred_fallthru
        _
      %p492 = scmp.le.s32.totalorder 2, %s13
      // Predicated region
      $region41: #{tpu_custom_call.1} parent=5 // pred_check
        %p493 = pneg %p492
      $region42: #{tpu_custom_call.1} parent=5 // pred_check_branch
        %495 = sbr.rel (%p493) target = $region44
      $region43: #{tpu_custom_call.1} parent=5 // pred_region
        %s496 = ssub.s32 %s13, 2
        // Predicated region
        $region45: #{tpu_custom_call.1} parent=43 // pred_check
          %p497 = pneg %p110
        $region46: #{tpu_custom_call.1} parent=43 // pred_check_branch
          %499 = sbr.rel (%p497) target = $region48
        $region47: #{tpu_custom_call.1} parent=43 // pred_region
          %s500 = sand.u32 %s95, 1
          %s501 = scalar_lea.sflag [#allocation5], %s500
          %s502 = sand.u32 %s95, 1
          %s503 = smul.addr %s502, 16
          %s504 = scalar_lea.vmem [#allocation6], %s503
          %505 = dma.done %s501, 256
        $region48: #{tpu_custom_call.1} parent=43 // pred_fallthru
          _
      $region44: #{tpu_custom_call.1} parent=5 // pred_fallthru
        _
    $region6: #{tpu_custom_call.1} parent=1 // loop_footer
      %s17 = sadd.s32 1, %s13
    $region7: #{tpu_custom_call.1} parent=1 // loop_footer_branch
      %12 = sbr.rel target = $region3
    $region8: #{tpu_custom_call.1} parent=1 // loop_exit
      _
    %506 = vsyncpa [#allocation4], 1
    %s507 = scalar_lea.sflag [#allocation4], 1
    %508 = vsyncpa %s507, 1
    %509 = vsyncpa [#allocation5], 1
    %s510 = scalar_lea.sflag [#allocation5], 1
    %511 = vsyncpa %s510, 1

</llo_original>
